<compile_context>
chip_gen: v7x
topology: tpu7x:2x2x1
jax: 0.10.0
libtpu: 0.0.40
codegen_flags: <defaults>
</compile_context>

<pallas_src>
import functools

import jax
import jax.numpy as jnp
from jax import lax
from jax.experimental import pallas as pl
from jax.experimental.pallas import tpu as pltpu

EPS = 1e-5

_VPU_CONV_MAX_C = 8            # at/below this channel count, do the 1x1 conv on the VPU
_BF16_MATMUL_MIN_C = 128       # at/above this, run the MXU dots in bf16 (f32 accumulate)
_MAX_BATCH_TILE = 16           # cap on samples per grid step (bounds unrolling / VMEM)
_TARGET_BLOCK_BYTES = 2 << 20  # ~2 MiB activation blocks: VMEM-safe on v5e/v6e/v7x


def _stats_and_norm(x, lnw, lnb):
    """One-pass IN + LN statistics and normalization.

    x: (B, C, HW) f32; lnw/lnb: (C, HW) f32.  Returns (inn, ln), each (B, C, HW) f32.
    """
    _, C, HW = x.shape
    inv_hw = jnp.float32(1.0 / HW)
    inv_chw = jnp.float32(1.0 / (C * HW))

    # Single pass over x: per-channel running sum and sum-of-squares.
    s1 = jnp.sum(x, axis=2, keepdims=True)        # (B, C, 1)
    s2 = jnp.sum(x * x, axis=2, keepdims=True)    # (B, C, 1)

    # InstanceNorm2d: per-sample, per-channel mean/biased-var over HW.
    mu_in = s1 * inv_hw
    var_in = s2 * inv_hw - mu_in * mu_in

    # LayerNorm over (C, H, W) per sample, derived from the same sums.
    mu_ln = jnp.sum(s1, axis=1, keepdims=True) * inv_chw                 # (B, 1, 1)
    var_ln = jnp.sum(s2, axis=1, keepdims=True) * inv_chw - mu_ln * mu_ln

    inn = (x - mu_in) * lax.rsqrt(var_in + EPS)
    ln = (x - mu_ln) * lax.rsqrt(var_ln + EPS)
    ln = ln * lnw[None] + lnb[None]
    return inn, ln


def _polin_kernel_mxu(x_ref, lnw_ref, lnb_ref, w_in_ref, w_ln_ref, o_ref, *,
                      use_bf16_matmul):
    """General path: 1x1 conv as two MXU dots per sample (no concat)."""
    x = x_ref[...].astype(jnp.float32)                                   # (B, C, HW)
    inn, ln = _stats_and_norm(x,
                              lnw_ref[...].astype(jnp.float32),
                              lnb_ref[...].astype(jnp.float32))

    mm_dtype = jnp.bfloat16 if use_bf16_matmul else jnp.float32
    w_in = w_in_ref[...].astype(mm_dtype)                                # (C, C)
    w_ln = w_ln_ref[...].astype(mm_dtype)                                # (C, C)

    # Short unrolled loop over the small batch tile: plain 2-D dots, f32 accumulate.
    B = x.shape[0]
    for b in range(B):
        out_b = (jnp.dot(w_in, inn[b].astype(mm_dtype),
                         preferred_element_type=jnp.float32)
                 + jnp.dot(w_ln, ln[b].astype(mm_dtype),
                           preferred_element_type=jnp.float32))          # (C, HW)
        o_ref[b] = out_b.astype(o_ref.dtype)


def _polin_kernel_vpu(x_ref, lnw_ref, lnb_ref, w_in_ref, w_ln_ref, o_ref):
    """Tiny-C path (C <= 8): 1x1 conv as VPU scalar*vector MACs; weights live in SMEM."""
    x = x_ref[...].astype(jnp.float32)                                   # (B, C, HW)
    inn, ln = _stats_and_norm(x,
                              lnw_ref[...].astype(jnp.float32),
                              lnb_ref[...].astype(jnp.float32))
    _, C, _ = x.shape

    # Hoist the per-input-channel rows once (static size-1 sublane slices).
    inn_rows = [inn[:, ci:ci + 1, :] for ci in range(C)]                 # each (B, 1, HW)
    ln_rows = [ln[:, ci:ci + 1, :] for ci in range(C)]

    for co in range(C):
        acc = inn_rows[0] * w_in_ref[co, 0] + ln_rows[0] * w_ln_ref[co, 0]
        for ci in range(1, C):
            acc = acc + inn_rows[ci] * w_in_ref[co, ci] + ln_rows[ci] * w_ln_ref[co, ci]
        o_ref[:, co:co + 1, :] = acc.astype(o_ref.dtype)


def _pick_batch_tile(n, c, hw, itemsize):
    """Samples per grid step: big enough to amortize per-step overhead, small enough to
    stay within ~2 MiB blocks (v7x-safe), and always leaving >= 2 grid steps (megacore)."""
    per_sample = max(c * hw * itemsize, 1)
    bt = max(1, _TARGET_BLOCK_BYTES // per_sample)
    bt = int(min(bt, _MAX_BATCH_TILE, n))
    if n >= 2:
        bt = min(bt, n // 2)
    bt = max(bt, 1)
    while n % bt != 0:
        bt -= 1
    return bt


def polin_forward(x, ln_weight, ln_bias, conv_weight_sn, *, batch_tile=None):
    """PoLIN_lazy forward.

    x: (N, C, H, W); ln_weight/ln_bias: (C, H, W);
    conv_weight_sn: (C, 2C) spectrally-normalized 1x1-conv weight
    ([:, :C] multiplies the IN branch, [:, C:] the LN branch).
    """
    N, C, H, W = x.shape
    HW = H * W
    x2 = x.reshape(N, C, HW)
    lnw = ln_weight.reshape(C, HW)
    lnb = ln_bias.reshape(C, HW)

    # Split the conv weight in the wrapper so the kernel never concatenates IN/LN.
    w_in = conv_weight_sn[:, :C]
    w_ln = conv_weight_sn[:, C:]

    if batch_tile is None:
        batch_tile = _pick_batch_tile(N, C, HW, x.dtype.itemsize)
    assert N % batch_tile == 0
    grid = (N // batch_tile,)

    use_vpu = C <= _VPU_CONV_MAX_C
    if use_vpu:
        kernel = _polin_kernel_vpu
        # Tiny (C, C) weight halves: keep them in SMEM and read them as scalars.
        w_spec = pl.BlockSpec(memory_space=pltpu.MemorySpace.SMEM)
    else:
        kernel = functools.partial(_polin_kernel_mxu,
                                   use_bf16_matmul=C >= _BF16_MATMUL_MIN_C)
        w_spec = pl.BlockSpec((C, C), lambda n: (0, 0))

    x_spec = pl.BlockSpec((batch_tile, C, HW), lambda n: (n, 0, 0))
    # lnw / lnb have constant index maps -> no re-DMA across grid steps.
    param_spec = pl.BlockSpec((C, HW), lambda n: (0, 0))
    out_spec = pl.BlockSpec((batch_tile, C, HW), lambda n: (n, 0, 0))

    # Memory-bound kernel: advisory cost hint so XLA overlaps it with neighbors.
    cost = pl.CostEstimate(
        flops=2 * N * C * (2 * C) * HW + 12 * N * C * HW,
        transcendentals=N * (C + 1),   # rsqrt per IN channel + one per-sample LN rsqrt
        bytes_accessed=4 * (2 * N * C * HW + 2 * C * HW + 2 * C * C),
    )

    out = pl.pallas_call(
        kernel,
        out_shape=jax.ShapeDtypeStruct((N, C, HW), x.dtype),
        grid_spec=pltpu.PrefetchScalarGridSpec(
            num_scalar_prefetch=0,
            grid=grid,
            in_specs=[x_spec, param_spec, param_spec, w_spec, w_spec],
            out_specs=out_spec,
        ),
        compiler_params=pltpu.CompilerParams(
            dimension_semantics=("parallel",),
        ),
        cost_estimate=cost,
    )(x2, lnw, lnb, w_in, w_ln)
    return out.reshape(N, C, H, W)


def spectral_normalize(w_mat, n_iters=5):
    """Deterministic power-iteration spectral normalization of an (out, in) matrix
    (mirrors torch.nn.utils.spectral_norm applied to a 1x1 conv weight).
    This is parameter-side glue done once in plain JAX, not per-forward kernel work."""
    assert n_iters >= 1
    u = jax.random.normal(jax.random.PRNGKey(1), (w_mat.shape[0],), jnp.float32)
    u = u / (jnp.linalg.norm(u) + 1e-12)
    v = w_mat.T @ u
    v = v / (jnp.linalg.norm(v) + 1e-12)
    for _ in range(n_iters):
        v = w_mat.T @ u
        v = v / (jnp.linalg.norm(v) + 1e-12)
        u = w_mat @ v
        u = u / (jnp.linalg.norm(u) + 1e-12)
    sigma = u @ (w_mat @ v)
    return w_mat / sigma


def reference(x, lnw, lnb, w_sn):
    """Pure-JAX reference of the PyTorch forward (two-pass variances)."""
    mu_in = x.mean(axis=(2, 3), keepdims=True)
    var_in = ((x - mu_in) ** 2).mean(axis=(2, 3), keepdims=True)
    inn = (x - mu_in) / jnp.sqrt(var_in + EPS)
    mu_ln = x.mean(axis=(1, 2, 3), keepdims=True)
    var_ln = ((x - mu_ln) ** 2).mean(axis=(1, 2, 3), keepdims=True)
    ln = (x - mu_ln) / jnp.sqrt(var_ln + EPS) * lnw[None] + lnb[None]
    lin = jnp.concatenate([inn, ln], axis=1)
    return jnp.einsum("oi,nihw->nohw", w_sn, lin)


if __name__ == "__main__":
    def _run_case(key, n, c, r, tag):
        kx, kw, kg, kb = jax.random.split(key, 4)
        x = jax.random.normal(kx, (n, c, r, r), dtype=jnp.float32)
        # PyTorch LayerNorm init is ones/zeros; use non-trivial values so the affine
        # path is actually exercised (the reference uses the same values).
        ln_weight = 1.0 + 0.1 * jax.random.normal(kg, (c, r, r), dtype=jnp.float32)
        ln_bias = 0.1 * jax.random.normal(kb, (c, r, r), dtype=jnp.float32)
        conv_w = jax.random.normal(kw, (c, 2 * c), dtype=jnp.float32) * 0.1
        conv_w_sn = spectral_normalize(conv_w)

        out = jax.block_until_ready(polin_forward(x, ln_weight, ln_bias, conv_w_sn))
        ref = reference(x, ln_weight, ln_bias, conv_w_sn)
        assert out.shape == (n, c, r, r), f"{tag}: bad output shape"
        assert jnp.allclose(out, ref, atol=2e-4, rtol=2e-4), f"{tag}: mismatch vs reference"

    key = jax.random.PRNGKey(0)
    k1, k2 = jax.random.split(key)
    # Small demo shape (VPU 1x1-conv path, C <= 8): batch=2, channels=4, resolution=16.
    _run_case(k1, 2, 4, 16, "vpu_path")
    # MXU path (C > 8): channel/resolution scale of the decoder at bottom_width=8.
    _run_case(k2, 2, 32, 8, "mxu_path")

    print("KERNEL_OK")
</pallas_src>

<mosaic_0001>
module attributes {stable_mosaic.version = 11 : i64} {
  func.func @_polin_kernel_vpu(%arg0: i32, %arg1: memref<1x4x256xf32, #tpu.memory_space<vmem>>, %arg2: memref<4x256xf32, #tpu.memory_space<vmem>>, %arg3: memref<4x256xf32, #tpu.memory_space<vmem>>, %arg4: memref<4x4xf32, #tpu.memory_space<smem>>, %arg5: memref<4x4xf32, #tpu.memory_space<smem>>, %arg6: memref<1x4x256xf32, #tpu.memory_space<vmem>>) attributes {dimension_semantics = [#tpu.dimension_semantics<parallel>], iteration_bounds = array<i64: 2>, scalar_prefetch = 0 : i64, scratch_operands = 0 : i64, tpu.core_type = #tpu.core_type<tc>, window_params = [{transform_indices = @transform_0, window_bounds = array<i64: 1, 4, 256>}, {pipeline_mode = #tpu.pipeline_mode<synchronous>, transform_indices = @transform_1, window_bounds = array<i64: 4, 256>}, {pipeline_mode = #tpu.pipeline_mode<synchronous>, transform_indices = @transform_2, window_bounds = array<i64: 4, 256>}, {transform_indices = @transform_3, window_bounds = array<i64: 4, 4>}, {transform_indices = @transform_4, window_bounds = array<i64: 4, 4>}, {transform_indices = @transform_5, window_bounds = array<i64: 1, 4, 256>}]} {
    %c0 = arith.constant 0 : index
    %c0_0 = arith.constant 0 : index
    %c0_1 = arith.constant 0 : index
    %0 = vector.load %arg1[%c0, %c0_0, %c0_1] : memref<1x4x256xf32, #tpu.memory_space<vmem>>, vector<1x4x256xf32>
    %c0_2 = arith.constant 0 : index
    %c0_3 = arith.constant 0 : index
    %1 = vector.load %arg2[%c0_2, %c0_3] : memref<4x256xf32, #tpu.memory_space<vmem>>, vector<4x256xf32>
    %c0_4 = arith.constant 0 : index
    %c0_5 = arith.constant 0 : index
    %2 = vector.load %arg3[%c0_4, %c0_5] : memref<4x256xf32, #tpu.memory_space<vmem>>, vector<4x256xf32>
    %cst = arith.constant dense<0.000000e+00> : vector<1x4xf32>
    %3 = vector.multi_reduction <add>, %0, %cst [2] : vector<1x4x256xf32> to vector<1x4xf32>
    %4 = vector.shape_cast %3 : vector<1x4xf32> to vector<1x4x1xf32>
    %5 = arith.mulf %0, %0 : vector<1x4x256xf32>
    %cst_6 = arith.constant dense<0.000000e+00> : vector<1x4xf32>
    %6 = vector.multi_reduction <add>, %5, %cst_6 [2] : vector<1x4x256xf32> to vector<1x4xf32>
    %7 = vector.shape_cast %6 : vector<1x4xf32> to vector<1x4x1xf32>
    %cst_7 = arith.constant 3.906250e-03 : f32
    %8 = vector.broadcast %cst_7 : f32 to vector<1x4x1xf32>
    %9 = arith.mulf %4, %8 : vector<1x4x1xf32>
    %cst_8 = arith.constant 3.906250e-03 : f32
    %10 = vector.broadcast %cst_8 : f32 to vector<1x4x1xf32>
    %11 = arith.mulf %7, %10 : vector<1x4x1xf32>
    %12 = arith.mulf %9, %9 : vector<1x4x1xf32>
    %13 = arith.subf %11, %12 : vector<1x4x1xf32>
    %cst_9 = arith.constant dense<0.000000e+00> : vector<1x1xf32>
    %14 = vector.multi_reduction <add>, %4, %cst_9 [1] : vector<1x4x1xf32> to vector<1x1xf32>
    %15 = vector.shape_cast %14 : vector<1x1xf32> to vector<1x1x1xf32>
    %cst_10 = arith.constant 9.765625E-4 : f32
    %16 = vector.broadcast %cst_10 : f32 to vector<1x1x1xf32>
    %17 = arith.mulf %15, %16 : vector<1x1x1xf32>
    %cst_11 = arith.constant dense<0.000000e+00> : vector<1x1xf32>
    %18 = vector.multi_reduction <add>, %7, %cst_11 [1] : vector<1x4x1xf32> to vector<1x1xf32>
    %19 = vector.shape_cast %18 : vector<1x1xf32> to vector<1x1x1xf32>
    %cst_12 = arith.constant 9.765625E-4 : f32
    %20 = vector.broadcast %cst_12 : f32 to vector<1x1x1xf32>
    %21 = arith.mulf %19, %20 : vector<1x1x1xf32>
    %22 = arith.mulf %17, %17 : vector<1x1x1xf32>
    %23 = arith.subf %21, %22 : vector<1x1x1xf32>
    %24 = vector.broadcast %9 : vector<1x4x1xf32> to vector<1x4x256xf32>
    %25 = arith.subf %0, %24 : vector<1x4x256xf32>
    %cst_13 = arith.constant 9.99999974E-6 : f32
    %26 = vector.broadcast %cst_13 : f32 to vector<1x4x1xf32>
    %27 = arith.addf %13, %26 : vector<1x4x1xf32>
    %28 = math.rsqrt %27 : vector<1x4x1xf32>
    %29 = vector.broadcast %28 : vector<1x4x1xf32> to vector<1x4x256xf32>
    %30 = arith.mulf %25, %29 : vector<1x4x256xf32>
    %31 = vector.broadcast %17 : vector<1x1x1xf32> to vector<1x4x256xf32>
    %32 = arith.subf %0, %31 : vector<1x4x256xf32>
    %cst_14 = arith.constant 9.99999974E-6 : f32
    %33 = vector.broadcast %cst_14 : f32 to vector<1x1x1xf32>
    %34 = arith.addf %23, %33 : vector<1x1x1xf32>
    %35 = math.rsqrt %34 : vector<1x1x1xf32>
    %36 = vector.broadcast %35 : vector<1x1x1xf32> to vector<1x4x256xf32>
    %37 = arith.mulf %32, %36 : vector<1x4x256xf32>
    %38 = vector.shape_cast %1 : vector<4x256xf32> to vector<1x4x256xf32>
    %39 = arith.mulf %37, %38 : vector<1x4x256xf32>
    %40 = vector.shape_cast %2 : vector<4x256xf32> to vector<1x4x256xf32>
    %41 = arith.addf %39, %40 : vector<1x4x256xf32>
    %42 = vector.extract_strided_slice %30 {offsets = [0, 0, 0], sizes = [1, 1, 256], strides = [1, 1, 1]} : vector<1x4x256xf32> to vector<1x1x256xf32>
    %43 = vector.extract_strided_slice %30 {offsets = [0, 1, 0], sizes = [1, 1, 256], strides = [1, 1, 1]} : vector<1x4x256xf32> to vector<1x1x256xf32>
    %44 = vector.extract_strided_slice %30 {offsets = [0, 2, 0], sizes = [1, 1, 256], strides = [1, 1, 1]} : vector<1x4x256xf32> to vector<1x1x256xf32>
    %45 = vector.extract_strided_slice %30 {offsets = [0, 3, 0], sizes = [1, 1, 256], strides = [1, 1, 1]} : vector<1x4x256xf32> to vector<1x1x256xf32>
    %46 = vector.extract_strided_slice %41 {offsets = [0, 0, 0], sizes = [1, 1, 256], strides = [1, 1, 1]} : vector<1x4x256xf32> to vector<1x1x256xf32>
    %47 = vector.extract_strided_slice %41 {offsets = [0, 1, 0], sizes = [1, 1, 256], strides = [1, 1, 1]} : vector<1x4x256xf32> to vector<1x1x256xf32>
    %48 = vector.extract_strided_slice %41 {offsets = [0, 2, 0], sizes = [1, 1, 256], strides = [1, 1, 1]} : vector<1x4x256xf32> to vector<1x1x256xf32>
    %49 = vector.extract_strided_slice %41 {offsets = [0, 3, 0], sizes = [1, 1, 256], strides = [1, 1, 1]} : vector<1x4x256xf32> to vector<1x1x256xf32>
    %c0_15 = arith.constant 0 : index
    %c0_16 = arith.constant 0 : index
    %50 = memref.load %arg4[%c0_15, %c0_16] : memref<4x4xf32, #tpu.memory_space<smem>>
    %51 = vector.broadcast %50 : f32 to vector<1x1x256xf32>
    %52 = arith.mulf %42, %51 : vector<1x1x256xf32>
    %c0_17 = arith.constant 0 : index
    %c0_18 = arith.constant 0 : index
    %53 = memref.load %arg5[%c0_17, %c0_18] : memref<4x4xf32, #tpu.memory_space<smem>>
    %54 = vector.broadcast %53 : f32 to vector<1x1x256xf32>
    %55 = arith.mulf %46, %54 : vector<1x1x256xf32>
    %56 = arith.addf %52, %55 : vector<1x1x256xf32>
    %c0_19 = arith.constant 0 : index
    %c1 = arith.constant 1 : index
    %57 = memref.load %arg4[%c0_19, %c1] : memref<4x4xf32, #tpu.memory_space<smem>>
    %58 = vector.broadcast %57 : f32 to vector<1x1x256xf32>
    %59 = arith.mulf %43, %58 : vector<1x1x256xf32>
    %60 = arith.addf %56, %59 : vector<1x1x256xf32>
    %c0_20 = arith.constant 0 : index
    %c1_21 = arith.constant 1 : index
    %61 = memref.load %arg5[%c0_20, %c1_21] : memref<4x4xf32, #tpu.memory_space<smem>>
    %62 = vector.broadcast %61 : f32 to vector<1x1x256xf32>
    %63 = arith.mulf %47, %62 : vector<1x1x256xf32>
    %64 = arith.addf %60, %63 : vector<1x1x256xf32>
    %c0_22 = arith.constant 0 : index
    %c2 = arith.constant 2 : index
    %65 = memref.load %arg4[%c0_22, %c2] : memref<4x4xf32, #tpu.memory_space<smem>>
    %66 = vector.broadcast %65 : f32 to vector<1x1x256xf32>
    %67 = arith.mulf %44, %66 : vector<1x1x256xf32>
    %68 = arith.addf %64, %67 : vector<1x1x256xf32>
    %c0_23 = arith.constant 0 : index
    %c2_24 = arith.constant 2 : index
    %69 = memref.load %arg5[%c0_23, %c2_24] : memref<4x4xf32, #tpu.memory_space<smem>>
    %70 = vector.broadcast %69 : f32 to vector<1x1x256xf32>
    %71 = arith.mulf %48, %70 : vector<1x1x256xf32>
    %72 = arith.addf %68, %71 : vector<1x1x256xf32>
    %c0_25 = arith.constant 0 : index
    %c3 = arith.constant 3 : index
    %73 = memref.load %arg4[%c0_25, %c3] : memref<4x4xf32, #tpu.memory_space<smem>>
    %74 = vector.broadcast %73 : f32 to vector<1x1x256xf32>
    %75 = arith.mulf %45, %74 : vector<1x1x256xf32>
    %76 = arith.addf %72, %75 : vector<1x1x256xf32>
    %c0_26 = arith.constant 0 : index
    %c3_27 = arith.constant 3 : index
    %77 = memref.load %arg5[%c0_26, %c3_27] : memref<4x4xf32, #tpu.memory_space<smem>>
    %78 = vector.broadcast %77 : f32 to vector<1x1x256xf32>
    %79 = arith.mulf %49, %78 : vector<1x1x256xf32>
    %80 = arith.addf %76, %79 : vector<1x1x256xf32>
    %c0_28 = arith.constant 0 : index
    %c0_29 = arith.constant 0 : index
    %c0_30 = arith.constant 0 : index
    %81 = vector.load %arg6[%c0_28, %c0_29, %c0_30] : memref<1x4x256xf32, #tpu.memory_space<vmem>>, vector<1x1x256xf32>
    tpu.vector_store %arg6[%c0_28, %c0_29, %c0_30], %80 {strides = array<i32>} : memref<1x4x256xf32, #tpu.memory_space<vmem>>, vector<1x1x256xf32>,
    %c1_31 = arith.constant 1 : index
    %c0_32 = arith.constant 0 : index
    %82 = memref.load %arg4[%c1_31, %c0_32] : memref<4x4xf32, #tpu.memory_space<smem>>
    %83 = vector.broadcast %82 : f32 to vector<1x1x256xf32>
    %84 = arith.mulf %42, %83 : vector<1x1x256xf32>
    %c1_33 = arith.constant 1 : index
    %c0_34 = arith.constant 0 : index
    %85 = memref.load %arg5[%c1_33, %c0_34] : memref<4x4xf32, #tpu.memory_space<smem>>
    %86 = vector.broadcast %85 : f32 to vector<1x1x256xf32>
    %87 = arith.mulf %46, %86 : vector<1x1x256xf32>
    %88 = arith.addf %84, %87 : vector<1x1x256xf32>
    %c1_35 = arith.constant 1 : index
    %c1_36 = arith.constant 1 : index
    %89 = memref.load %arg4[%c1_35, %c1_36] : memref<4x4xf32, #tpu.memory_space<smem>>
    %90 = vector.broadcast %89 : f32 to vector<1x1x256xf32>
    %91 = arith.mulf %43, %90 : vector<1x1x256xf32>
    %92 = arith.addf %88, %91 : vector<1x1x256xf32>
    %c1_37 = arith.constant 1 : index
    %c1_38 = arith.constant 1 : index
    %93 = memref.load %arg5[%c1_37, %c1_38] : memref<4x4xf32, #tpu.memory_space<smem>>
    %94 = vector.broadcast %93 : f32 to vector<1x1x256xf32>
    %95 = arith.mulf %47, %94 : vector<1x1x256xf32>
    %96 = arith.addf %92, %95 : vector<1x1x256xf32>
    %c1_39 = arith.constant 1 : index
    %c2_40 = arith.constant 2 : index
    %97 = memref.load %arg4[%c1_39, %c2_40] : memref<4x4xf32, #tpu.memory_space<smem>>
    %98 = vector.broadcast %97 : f32 to vector<1x1x256xf32>
    %99 = arith.mulf %44, %98 : vector<1x1x256xf32>
    %100 = arith.addf %96, %99 : vector<1x1x256xf32>
    %c1_41 = arith.constant 1 : index
    %c2_42 = arith.constant 2 : index
    %101 = memref.load %arg5[%c1_41, %c2_42] : memref<4x4xf32, #tpu.memory_space<smem>>
    %102 = vector.broadcast %101 : f32 to vector<1x1x256xf32>
    %103 = arith.mulf %48, %102 : vector<1x1x256xf32>
    %104 = arith.addf %100, %103 : vector<1x1x256xf32>
    %c1_43 = arith.constant 1 : index
    %c3_44 = arith.constant 3 : index
    %105 = memref.load %arg4[%c1_43, %c3_44] : memref<4x4xf32, #tpu.memory_space<smem>>
    %106 = vector.broadcast %105 : f32 to vector<1x1x256xf32>
    %107 = arith.mulf %45, %106 : vector<1x1x256xf32>
    %108 = arith.addf %104, %107 : vector<1x1x256xf32>
    %c1_45 = arith.constant 1 : index
    %c3_46 = arith.constant 3 : index
    %109 = memref.load %arg5[%c1_45, %c3_46] : memref<4x4xf32, #tpu.memory_space<smem>>
    %110 = vector.broadcast %109 : f32 to vector<1x1x256xf32>
    %111 = arith.mulf %49, %110 : vector<1x1x256xf32>
    %112 = arith.addf %108, %111 : vector<1x1x256xf32>
    %c0_47 = arith.constant 0 : index
    %c1_48 = arith.constant 1 : index
    %c0_49 = arith.constant 0 : index
    %113 = vector.load %arg6[%c0_47, %c1_48, %c0_49] : memref<1x4x256xf32, #tpu.memory_space<vmem>>, vector<1x1x256xf32>
    tpu.vector_store %arg6[%c0_47, %c1_48, %c0_49], %112 {strides = array<i32>} : memref<1x4x256xf32, #tpu.memory_space<vmem>>, vector<1x1x256xf32>,
    %c2_50 = arith.constant 2 : index
    %c0_51 = arith.constant 0 : index
    %114 = memref.load %arg4[%c2_50, %c0_51] : memref<4x4xf32, #tpu.memory_space<smem>>
    %115 = vector.broadcast %114 : f32 to vector<1x1x256xf32>
    %116 = arith.mulf %42, %115 : vector<1x1x256xf32>
    %c2_52 = arith.constant 2 : index
    %c0_53 = arith.constant 0 : index
    %117 = memref.load %arg5[%c2_52, %c0_53] : memref<4x4xf32, #tpu.memory_space<smem>>
    %118 = vector.broadcast %117 : f32 to vector<1x1x256xf32>
    %119 = arith.mulf %46, %118 : vector<1x1x256xf32>
    %120 = arith.addf %116, %119 : vector<1x1x256xf32>
    %c2_54 = arith.constant 2 : index
    %c1_55 = arith.constant 1 : index
    %121 = memref.load %arg4[%c2_54, %c1_55] : memref<4x4xf32, #tpu.memory_space<smem>>
    %122 = vector.broadcast %121 : f32 to vector<1x1x256xf32>
    %123 = arith.mulf %43, %122 : vector<1x1x256xf32>
    %124 = arith.addf %120, %123 : vector<1x1x256xf32>
    %c2_56 = arith.constant 2 : index
    %c1_57 = arith.constant 1 : index
    %125 = memref.load %arg5[%c2_56, %c1_57] : memref<4x4xf32, #tpu.memory_space<smem>>
    %126 = vector.broadcast %125 : f32 to vector<1x1x256xf32>
    %127 = arith.mulf %47, %126 : vector<1x1x256xf32>
    %128 = arith.addf %124, %127 : vector<1x1x256xf32>
    %c2_58 = arith.constant 2 : index
    %c2_59 = arith.constant 2 : index
    %129 = memref.load %arg4[%c2_58, %c2_59] : memref<4x4xf32, #tpu.memory_space<smem>>
    %130 = vector.broadcast %129 : f32 to vector<1x1x256xf32>
    %131 = arith.mulf %44, %130 : vector<1x1x256xf32>
    %132 = arith.addf %128, %131 : vector<1x1x256xf32>
    %c2_60 = arith.constant 2 : index
    %c2_61 = arith.constant 2 : index
    %133 = memref.load %arg5[%c2_60, %c2_61] : memref<4x4xf32, #tpu.memory_space<smem>>
    %134 = vector.broadcast %133 : f32 to vector<1x1x256xf32>
    %135 = arith.mulf %48, %134 : vector<1x1x256xf32>
    %136 = arith.addf %132, %135 : vector<1x1x256xf32>
    %c2_62 = arith.constant 2 : index
    %c3_63 = arith.constant 3 : index
    %137 = memref.load %arg4[%c2_62, %c3_63] : memref<4x4xf32, #tpu.memory_space<smem>>
    %138 = vector.broadcast %137 : f32 to vector<1x1x256xf32>
    %139 = arith.mulf %45, %138 : vector<1x1x256xf32>
    %140 = arith.addf %136, %139 : vector<1x1x256xf32>
    %c2_64 = arith.constant 2 : index
    %c3_65 = arith.constant 3 : index
    %141 = memref.load %arg5[%c2_64, %c3_65] : memref<4x4xf32, #tpu.memory_space<smem>>
    %142 = vector.broadcast %141 : f32 to vector<1x1x256xf32>
    %143 = arith.mulf %49, %142 : vector<1x1x256xf32>
    %144 = arith.addf %140, %143 : vector<1x1x256xf32>
    %c0_66 = arith.constant 0 : index
    %c2_67 = arith.constant 2 : index
    %c0_68 = arith.constant 0 : index
    %145 = vector.load %arg6[%c0_66, %c2_67, %c0_68] : memref<1x4x256xf32, #tpu.memory_space<vmem>>, vector<1x1x256xf32>
    tpu.vector_store %arg6[%c0_66, %c2_67, %c0_68], %144 {strides = array<i32>} : memref<1x4x256xf32, #tpu.memory_space<vmem>>, vector<1x1x256xf32>,
    %c3_69 = arith.constant 3 : index
    %c0_70 = arith.constant 0 : index
    %146 = memref.load %arg4[%c3_69, %c0_70] : memref<4x4xf32, #tpu.memory_space<smem>>
    %147 = vector.broadcast %146 : f32 to vector<1x1x256xf32>
    %148 = arith.mulf %42, %147 : vector<1x1x256xf32>
    %c3_71 = arith.constant 3 : index
    %c0_72 = arith.constant 0 : index
    %149 = memref.load %arg5[%c3_71, %c0_72] : memref<4x4xf32, #tpu.memory_space<smem>>
    %150 = vector.broadcast %149 : f32 to vector<1x1x256xf32>
    %151 = arith.mulf %46, %150 : vector<1x1x256xf32>
    %152 = arith.addf %148, %151 : vector<1x1x256xf32>
    %c3_73 = arith.constant 3 : index
    %c1_74 = arith.constant 1 : index
    %153 = memref.load %arg4[%c3_73, %c1_74] : memref<4x4xf32, #tpu.memory_space<smem>>
    %154 = vector.broadcast %153 : f32 to vector<1x1x256xf32>
    %155 = arith.mulf %43, %154 : vector<1x1x256xf32>
    %156 = arith.addf %152, %155 : vector<1x1x256xf32>
    %c3_75 = arith.constant 3 : index
    %c1_76 = arith.constant 1 : index
    %157 = memref.load %arg5[%c3_75, %c1_76] : memref<4x4xf32, #tpu.memory_space<smem>>
    %158 = vector.broadcast %157 : f32 to vector<1x1x256xf32>
    %159 = arith.mulf %47, %158 : vector<1x1x256xf32>
    %160 = arith.addf %156, %159 : vector<1x1x256xf32>
    %c3_77 = arith.constant 3 : index
    %c2_78 = arith.constant 2 : index
    %161 = memref.load %arg4[%c3_77, %c2_78] : memref<4x4xf32, #tpu.memory_space<smem>>
    %162 = vector.broadcast %161 : f32 to vector<1x1x256xf32>
    %163 = arith.mulf %44, %162 : vector<1x1x256xf32>
    %164 = arith.addf %160, %163 : vector<1x1x256xf32>
    %c3_79 = arith.constant 3 : index
    %c2_80 = arith.constant 2 : index
    %165 = memref.load %arg5[%c3_79, %c2_80] : memref<4x4xf32, #tpu.memory_space<smem>>
    %166 = vector.broadcast %165 : f32 to vector<1x1x256xf32>
    %167 = arith.mulf %48, %166 : vector<1x1x256xf32>
    %168 = arith.addf %164, %167 : vector<1x1x256xf32>
    %c3_81 = arith.constant 3 : index
    %c3_82 = arith.constant 3 : index
    %169 = memref.load %arg4[%c3_81, %c3_82] : memref<4x4xf32, #tpu.memory_space<smem>>
    %170 = vector.broadcast %169 : f32 to vector<1x1x256xf32>
    %171 = arith.mulf %45, %170 : vector<1x1x256xf32>
    %172 = arith.addf %168, %171 : vector<1x1x256xf32>
    %c3_83 = arith.constant 3 : index
    %c3_84 = arith.constant 3 : index
    %173 = memref.load %arg5[%c3_83, %c3_84] : memref<4x4xf32, #tpu.memory_space<smem>>
    %174 = vector.broadcast %173 : f32 to vector<1x1x256xf32>
    %175 = arith.mulf %49, %174 : vector<1x1x256xf32>
    %176 = arith.addf %172, %175 : vector<1x1x256xf32>
    %c0_85 = arith.constant 0 : index
    %c3_86 = arith.constant 3 : index
    %c0_87 = arith.constant 0 : index
    %177 = vector.load %arg6[%c0_85, %c3_86, %c0_87] : memref<1x4x256xf32, #tpu.memory_space<vmem>>, vector<1x1x256xf32>
    tpu.vector_store %arg6[%c0_85, %c3_86, %c0_87], %176 {strides = array<i32>} : memref<1x4x256xf32, #tpu.memory_space<vmem>>, vector<1x1x256xf32>,
    return
  }
  func.func @transform_0(%arg0: i32) -> (i32, i32, i32) {
    %c0_i32 = arith.constant 0 : i32
    %c0_i32_0 = arith.constant 0 : i32
    %c0_i32_1 = arith.constant 0 : i32
    return %arg0, %c0_i32, %c0_i32_0 : i32, i32, i32
  }
  func.func @transform_1(%arg0: i32) -> (i32, i32) {
    %c0_i32 = arith.constant 0 : i32
    %c0_i32_0 = arith.constant 0 : i32
    %c0_i32_1 = arith.constant 0 : i32
    return %c0_i32, %c0_i32_0 : i32, i32
  }
  func.func @transform_2(%arg0: i32) -> (i32, i32) {
    %c0_i32 = arith.constant 0 : i32
    %c0_i32_0 = arith.constant 0 : i32
    %c0_i32_1 = arith.constant 0 : i32
    return %c0_i32, %c0_i32_0 : i32, i32
  }
  func.func @transform_3(%arg0: i32) -> (i32, i32) {
    %c0_i32 = arith.constant 0 : i32
    %c0_i32_0 = arith.constant 0 : i32
    %c0_i32_1 = arith.constant 0 : i32
    return %c0_i32, %c0_i32_0 : i32, i32
  }
  func.func @transform_4(%arg0: i32) -> (i32, i32) {
    %c0_i32 = arith.constant 0 : i32
    %c0_i32_0 = arith.constant 0 : i32
    %c0_i32_1 = arith.constant 0 : i32
    return %c0_i32, %c0_i32_0 : i32, i32
  }
  func.func @transform_5(%arg0: i32) -> (i32, i32, i32) {
    %c0_i32 = arith.constant 0 : i32
    %c0_i32_0 = arith.constant 0 : i32
    %c0_i32_1 = arith.constant 0 : i32
    return %arg0, %c0_i32, %c0_i32_0 : i32, i32, i32
  }
}

</mosaic_0001>

<llo_original>
// kernel: tpu_custom_call.1
$region0: #{tpu_custom_call.1}
  #allocation0 [shape = 'u32[]', space=smem, size = 0x4, offset = 0x4, fixed_abs, tag = 'smem constant byte address 0x4 - core index']
  #allocation1 [shape = 'u32[144,128]{1,0:T(1,128)}', space=vmem, size = 0x12000, scoped, tag = 'internal scratch']
  %s0 = inlined_call_operand.hbm [shape: f32[2,4,256], index: 0, kind: input, shape index: {}]
  %s1 = inlined_call_operand.hbm [shape: f32[4,256], index: 1, kind: input, shape index: {}]
  %s2 = inlined_call_operand.hbm [shape: f32[4,256], index: 2, kind: input, shape index: {}]
  %s3 = inlined_call_operand.vmem [shape: f32[4,4], index: 3, kind: input, shape index: {}]
  %s4 = inlined_call_operand.vmem [shape: f32[4,4], index: 4, kind: input, shape index: {}]
  %s5 = inlined_call_operand.hbm [shape: f32[2,4,256], index: 5, kind: output, shape index: {}]
  %s6 = sld [smem:[#allocation0]]
  $region73: #{tpu_custom_call.1} parent=0
    _
  %s8 = ssub.s32 1, %s6
  %s9 = scalar_select 0, %s8, %s6
  $region1: #{tpu_custom_call.1} parent=0
    #allocation2 [shape = 'u8[8192]{0}', space=vmem, size = 0x2000, scoped, tag = 'input window, operand 0']
    #allocation3 [shape = 's32[2]{0}', space=sflag, size = 0x8, scoped, tag = 'scoped memory for tpu_custom_call.1']
    #allocation4 [shape = 's32[2]{0}', space=sflag, size = 0x8, scoped, tag = 'scoped memory for tpu_custom_call.1']
    #allocation5 [shape = 's32[2]{0}', space=sflag, size = 0x8, scoped, tag = 'scoped memory for tpu_custom_call.1']
    #allocation6 [shape = 'u8[4096]{0}', space=vmem, size = 0x1000, scoped, tag = 'input window, operand 1, single buffered']
    #allocation7 [shape = 's32[1]{0}', space=sflag, size = 0x4, scoped, tag = 'scoped memory for tpu_custom_call.1']
    #allocation8 [shape = 'u8[4096]{0}', space=vmem, size = 0x1000, scoped, tag = 'input window, operand 2, single buffered']
    #allocation9 [shape = 'u8[2048]{0}', space=smem, size = 0x800, scoped, tag = 'input window, operand 3, single buffered']
    #allocation10 [shape = 'u8[2048]{0}', space=smem, size = 0x800, scoped, tag = 'input window, operand 4, single buffered']
    #allocation11 [shape = 's32[1]{0}', space=sflag, size = 0x4, scoped, tag = 'scoped memory for tpu_custom_call.1']
    #allocation12 [shape = 'u8[8192]{0}', space=vmem, size = 0x2000, scoped, tag = 'output window, operand 0']
    %10 = vsyncpa [#allocation3], 0
    %s11 = scalar_lea.sflag [#allocation3], 1
    %12 = vsyncpa %s11, 0
    %13 = vsyncpa [#allocation7], 0
    %14 = vsyncpa [#allocation5], 0
    %15 = vsyncpa [#allocation11], 0
    %16 = vsyncpa [#allocation4], 0
    %s17 = scalar_lea.sflag [#allocation4], 1
    %18 = vsyncpa %s17, 0
    loop: start=0, step=1, limit=4
    $region2: #{tpu_custom_call.1} parent=1 // loop_pre_header
      _
    $region3: #{tpu_custom_call.1} parent=1 // loop_header
      %s20 = sphi 0, %s24
      %p21 = scmp.ge.s32.totalorder %s20, 4
      %s30 = sphi 0, %s32
      %s33 = sphi 0, %s30
      %s34 = sphi 0, %s33
      %s50 = sphi 0, %s34
      %s54 = sphi 0, %s54
      %s56 = sphi 0, %s54
      %s57 = sphi 0, %s56
      %s71 = sphi 0, %s57
      %s75 = sphi 0, %s75
      %s77 = sphi 0, %s75
      %s78 = sphi 0, %s77
      %s92 = sphi 0, %s78
      %s96 = sphi 0, %s96
      %s98 = sphi 0, %s96
      %s99 = sphi 0, %s98
      %s113 = sphi 0, %s99
      %s117 = sphi 0, %s117
      %s119 = sphi 0, %s117
      %s120 = sphi 0, %s119
      %s134 = sphi 0, %s120
      %s140 = sphi 0, %s142
      %s143 = sphi 0, %s140
      %s144 = sphi 0, %s143
      %s160 = sphi 0, %s144
    $region4: #{tpu_custom_call.1} parent=1 // loop_header_branch
      %23 = sbr.rel (%p21) target = $region8
    $region5: #{tpu_custom_call.1} parent=1 // loop_body
      %s25 = ssub.s32 %s20, 1
      %s26 = ssub.s32 %s20, 2
      %s27 = sadd.s32 %s20, 1
      %s28 = ssub.s32 %s20, %s27
      %p29 = scmp.eq.s32.totalorder %s28, 0
      %s31 = sadd.s32 %s30, 1
      %s32 = scalar_select %p29, %s30, %s31
      %p35 = pneg %p29
      %p36 = scmp.eq.s32.totalorder %s20, 1
      %p37 = por %p35, %p36
      %p38 = scmp.ne.s32.totalorder %s30, %s33
      %p39 = scmp.eq.s32.totalorder %s20, 0
      %p40 = por %p38, %p39
      %p41 = scmp.ne.s32.totalorder %s30, %s33
      %p42 = scmp.eq.s32.totalorder %s25, 1
      %p43 = por %p41, %p42
      %p44 = scmp.ne.s32.totalorder %s33, %s34
      %p45 = scmp.eq.s32.totalorder %s25, 0
      %p46 = por %p44, %p45
      %p47 = scmp.ne.s32.totalorder %s33, %s34
      %p48 = scmp.eq.s32.totalorder %s26, 1
      %p49 = por %p47, %p48
      %p51 = scmp.ne.s32.totalorder %s34, %s50
      %p52 = scmp.eq.s32.totalorder %s26, 0
      %p53 = por %p51, %p52
      %s55 = sadd.s32 %s54, 1
      %p58 = scmp.eq.s32.totalorder %s20, 1
      %p59 = scmp.ne.s32.totalorder %s54, %s56
      %p60 = scmp.eq.s32.totalorder %s20, 0
      %p61 = por %p59, %p60
      %p62 = scmp.ne.s32.totalorder %s54, %s56
      %p63 = scmp.eq.s32.totalorder %s25, 1
      %p64 = por %p62, %p63
      %p65 = scmp.ne.s32.totalorder %s56, %s57
      %p66 = scmp.eq.s32.totalorder %s25, 0
      %p67 = por %p65, %p66
      %p68 = scmp.ne.s32.totalorder %s56, %s57
      %p69 = scmp.eq.s32.totalorder %s26, 1
      %p70 = por %p68, %p69
      %p72 = scmp.ne.s32.totalorder %s57, %s71
      %p73 = scmp.eq.s32.totalorder %s26, 0
      %p74 = por %p72, %p73
      %s76 = sadd.s32 %s75, 1
      %p79 = scmp.eq.s32.totalorder %s20, 1
      %p80 = scmp.ne.s32.totalorder %s75, %s77
      %p81 = scmp.eq.s32.totalorder %s20, 0
      %p82 = por %p80, %p81
      %p83 = scmp.ne.s32.totalorder %s75, %s77
      %p84 = scmp.eq.s32.totalorder %s25, 1
      %p85 = por %p83, %p84
      %p86 = scmp.ne.s32.totalorder %s77, %s78
      %p87 = scmp.eq.s32.totalorder %s25, 0
      %p88 = por %p86, %p87
      %p89 = scmp.ne.s32.totalorder %s77, %s78
      %p90 = scmp.eq.s32.totalorder %s26, 1
      %p91 = por %p89, %p90
      %p93 = scmp.ne.s32.totalorder %s78, %s92
      %p94 = scmp.eq.s32.totalorder %s26, 0
      %p95 = por %p93, %p94
      %s97 = sadd.s32 %s96, 1
      %p100 = scmp.eq.s32.totalorder %s20, 1
      %p101 = scmp.ne.s32.totalorder %s96, %s98
      %p102 = scmp.eq.s32.totalorder %s20, 0
      %p103 = por %p101, %p102
      %p104 = scmp.ne.s32.totalorder %s96, %s98
      %p105 = scmp.eq.s32.totalorder %s25, 1
      %p106 = por %p104, %p105
      %p107 = scmp.ne.s32.totalorder %s98, %s99
      %p108 = scmp.eq.s32.totalorder %s25, 0
      %p109 = por %p107, %p108
      %p110 = scmp.ne.s32.totalorder %s98, %s99
      %p111 = scmp.eq.s32.totalorder %s26, 1
      %p112 = por %p110, %p111
      %p114 = scmp.ne.s32.totalorder %s99, %s113
      %p115 = scmp.eq.s32.totalorder %s26, 0
      %p116 = por %p114, %p115
      %s118 = sadd.s32 %s117, 1
      %p121 = scmp.eq.s32.totalorder %s20, 1
      %p122 = scmp.ne.s32.totalorder %s117, %s119
      %p123 = scmp.eq.s32.totalorder %s20, 0
      %p124 = por %p122, %p123
      %p125 = scmp.ne.s32.totalorder %s117, %s119
      %p126 = scmp.eq.s32.totalorder %s25, 1
      %p127 = por %p125, %p126
      %p128 = scmp.ne.s32.totalorder %s119, %s120
      %p129 = scmp.eq.s32.totalorder %s25, 0
      %p130 = por %p128, %p129
      %p131 = scmp.ne.s32.totalorder %s119, %s120
      %p132 = scmp.eq.s32.totalorder %s26, 1
      %p133 = por %p131, %p132
      %p135 = scmp.ne.s32.totalorder %s120, %s134
      %p136 = scmp.eq.s32.totalorder %s26, 0
      %p137 = por %p135, %p136
      %s138 = ssub.s32 %s20, %s27
      %p139 = scmp.eq.s32.totalorder %s138, 0
      %s141 = sadd.s32 %s140, 1
      %s142 = scalar_select %p139, %s140, %s141
      %p145 = pneg %p139
      %p146 = scmp.eq.s32.totalorder %s20, 1
      %p147 = por %p145, %p146
      %p148 = scmp.ne.s32.totalorder %s140, %s143
      %p149 = scmp.eq.s32.totalorder %s20, 0
      %p150 = por %p148, %p149
      %p151 = scmp.ne.s32.totalorder %s140, %s143
      %p152 = scmp.eq.s32.totalorder %s25, 1
      %p153 = por %p151, %p152
      %p154 = scmp.ne.s32.totalorder %s143, %s144
      %p155 = scmp.eq.s32.totalorder %s25, 0
      %p156 = por %p154, %p155
      %p157 = scmp.ne.s32.totalorder %s143, %s144
      %p158 = scmp.eq.s32.totalorder %s26, 1
      %p159 = por %p157, %p158
      %p161 = scmp.ne.s32.totalorder %s144, %s160
      %p162 = scmp.eq.s32.totalorder %s26, 0
      %p163 = por %p161, %p162
      %p164 = scmp.le.s32.totalorder 1, %s20
      %p165 = scmp.lt.s32.totalorder %s20, 3
      %p166 = pnand %p164, %p165
      %p167 = pneg %p166
      // Predicated region
      $region9: #{tpu_custom_call.1} parent=5 // pred_check
        _
      $region10: #{tpu_custom_call.1} parent=5 // pred_check_branch
        %169 = sbr.rel (%p166) target = $region12
      $region11: #{tpu_custom_call.1} parent=5 // pred_region
        %s170 = ssub.s32 %s20, 1
        // Predicated region
        $region13: #{tpu_custom_call.1} parent=11 // pred_check
          %p171 = pneg %p67
        $region14: #{tpu_custom_call.1} parent=11 // pred_check_branch
          %173 = sbr.rel (%p171) target = $region16
        $region15: #{tpu_custom_call.1} parent=11 // pred_region
          %s175 = ssub.s32 128, 128
          %176 = vsyncadd [#allocation7], %s175
          %s178 = sshll.u32 [#allocation6], 4
          %s179 = int_to_ptr.vmem [resolvable:$true] %s178
          %181 = dma.hbm_to_vmem [thread:$0]  %s1, 128, %s179, [#allocation7]
        $region16: #{tpu_custom_call.1} parent=11 // pred_fallthru
          _
        // Predicated region
        $region17: #{tpu_custom_call.1} parent=11 // pred_check
          %p182 = pneg %p88
        $region18: #{tpu_custom_call.1} parent=11 // pred_check_branch
          %184 = sbr.rel (%p182) target = $region20
        $region19: #{tpu_custom_call.1} parent=11 // pred_region
          %s186 = ssub.s32 128, 128
          %187 = vsyncadd [#allocation7], %s186
          %s189 = sshll.u32 [#allocation8], 4
          %s190 = int_to_ptr.vmem [resolvable:$true] %s189
          %192 = dma.hbm_to_vmem [thread:$0]  %s2, 128, %s190, [#allocation7]
        $region20: #{tpu_custom_call.1} parent=11 // pred_fallthru
          _
        // Predicated region
        $region21: #{tpu_custom_call.1} parent=11 // pred_check
          %p193 = pneg %p109
        $region22: #{tpu_custom_call.1} parent=11 // pred_check_branch
          %195 = sbr.rel (%p193) target = $region24
        $region23: #{tpu_custom_call.1} parent=11 // pred_region
          %s197 = ssub.s32 64, 64
          %198 = vsyncadd [#allocation5], %s197
          %s200 = sshll.u32 %s3, 4
          %s201 = int_to_ptr.vmem [resolvable:$true] %s200
          %203 = dma.vmem_to_smem %s201, 64, [#allocation9], [#allocation5]
        $region24: #{tpu_custom_call.1} parent=11 // pred_fallthru
          _
        // Predicated region
        $region25: #{tpu_custom_call.1} parent=11 // pred_check
          %p204 = pneg %p130
        $region26: #{tpu_custom_call.1} parent=11 // pred_check_branch
          %206 = sbr.rel (%p204) target = $region28
        $region27: #{tpu_custom_call.1} parent=11 // pred_region
          %s208 = ssub.s32 64, 64
          %209 = vsyncadd [#allocation11], %s208
          %s211 = sshll.u32 %s4, 4
          %s212 = int_to_ptr.vmem [resolvable:$true] %s211
          %214 = dma.vmem_to_smem %s212, 64, [#allocation10], [#allocation11]
        $region28: #{tpu_custom_call.1} parent=11 // pred_fallthru
          _
      $region12: #{tpu_custom_call.1} parent=5 // pred_fallthru
        _
      %p215 = scmp.lt.s32.totalorder %s20, 2
      // Predicated region
      $region29: #{tpu_custom_call.1} parent=5 // pred_check
        %p216 = pneg %p215
      $region30: #{tpu_custom_call.1} parent=5 // pred_check_branch
        %218 = sbr.rel (%p216) target = $region32
      $region31: #{tpu_custom_call.1} parent=5 // pred_region
        // Predicated region
        $region33: #{tpu_custom_call.1} parent=31 // pred_check
          %p219 = pneg %p40
        $region34: #{tpu_custom_call.1} parent=31 // pred_check_branch
          %221 = sbr.rel (%p219) target = $region36
        $region35: #{tpu_custom_call.1} parent=31 // pred_region
          %s222 = sand.u32 %s30, 1
          %s223 = scalar_lea.sflag [#allocation3], %s222
          %s224 = sand.u32 %s30, 1
          %s225 = smul.addr %s224, 8
          %s226 = scalar_lea.vmem [#allocation2], %s225
          %s228 = ssub.s32 128, 128
          %229 = vsyncadd %s223, %s228
          %s230 = smul.addr %s20, 2
          %s231 = smul.addr %s230, 64
          %s232 = scalar_lea.hbm %s0, %s231
          %s234 = sshll.u32 %s226, 4
          %s235 = int_to_ptr.vmem [resolvable:$true] %s234
          %237 = dma.hbm_to_vmem [thread:$0]  %s232, 128, %s235, %s223
        $region36: #{tpu_custom_call.1} parent=31 // pred_fallthru
          _
      $region32: #{tpu_custom_call.1} parent=5 // pred_fallthru
        _
      %p238 = scmp.le.s32.totalorder 1, %s20
      %p239 = scmp.lt.s32.totalorder %s20, 3
      %p240 = pnand %p238, %p239
      %p241 = pneg %p240
      // Predicated region
      $region37: #{tpu_custom_call.1} parent=5 // pred_check
        _
      $region38: #{tpu_custom_call.1} parent=5 // pred_check_branch
        %243 = sbr.rel (%p240) target = $region40
      $region39: #{tpu_custom_call.1} parent=5 // pred_region
        %s244 = ssub.s32 %s20, 1
        %s245 = sand.u32 %s33, 1
        %s246 = scalar_lea.sflag [#allocation3], %s245
        %s247 = sand.u32 %s33, 1
        %s248 = smul.addr %s247, 8
        %s249 = scalar_lea.vmem [#allocation2], %s248
        // Predicated region
        $region41: #{tpu_custom_call.1} parent=39 // pred_check
          %p250 = pneg %p46
        $region42: #{tpu_custom_call.1} parent=39 // pred_check_branch
          %252 = sbr.rel (%p250) target = $region44
        $region43: #{tpu_custom_call.1} parent=39 // pred_region
          %253 = dma.done %s246, 128
        $region44: #{tpu_custom_call.1} parent=39 // pred_fallthru
          _
        // Predicated region
        $region45: #{tpu_custom_call.1} parent=39 // pred_check
          %p254 = pneg %p67
        $region46: #{tpu_custom_call.1} parent=39 // pred_check_branch
          %256 = sbr.rel (%p254) target = $region48
        $region47: #{tpu_custom_call.1} parent=39 // pred_region
          %257 = dma.done [#allocation7], 128
        $region48: #{tpu_custom_call.1} parent=39 // pred_fallthru
          _
        // Predicated region
        $region49: #{tpu_custom_call.1} parent=39 // pred_check
          %p258 = pneg %p88
        $region50: #{tpu_custom_call.1} parent=39 // pred_check_branch
          %260 = sbr.rel (%p258) target = $region52
        $region51: #{tpu_custom_call.1} parent=39 // pred_region
          %261 = dma.done [#allocation7], 128
        $region52: #{tpu_custom_call.1} parent=39 // pred_fallthru
          _
        // Predicated region
        $region53: #{tpu_custom_call.1} parent=39 // pred_check
          %p262 = pneg %p109
        $region54: #{tpu_custom_call.1} parent=39 // pred_check_branch
          %264 = sbr.rel (%p262) target = $region56
        $region55: #{tpu_custom_call.1} parent=39 // pred_region
          %265 = dma.done [#allocation5], 64
        $region56: #{tpu_custom_call.1} parent=39 // pred_fallthru
          _
        // Predicated region
        $region57: #{tpu_custom_call.1} parent=39 // pred_check
          %p266 = pneg %p130
        $region58: #{tpu_custom_call.1} parent=39 // pred_check_branch
          %268 = sbr.rel (%p266) target = $region60
        $region59: #{tpu_custom_call.1} parent=39 // pred_region
          %269 = dma.done [#allocation11], 64
        $region60: #{tpu_custom_call.1} parent=39 // pred_fallthru
          _
        %270 = sfence
        %s271 = sand.u32 %s33, 1
        %s272 = scalar_lea.sflag [#allocation3], %s271
        %s273 = sand.u32 %s33, 1
        %s274 = smul.addr %s273, 8
        %s275 = scalar_lea.vmem [#allocation2], %s274
        %p276 = pneg %p46
        %p277 = pneg %p43
        %p278 = pneg %p67
        %p279 = pneg %p64
        %p280 = pneg %p88
        %p281 = pneg %p85
        %p282 = pneg %p109
        %p283 = pneg %p106
        %p284 = pneg %p130
        %p285 = pneg %p127
        %p286 = pneg %p156
        %p287 = pneg %p153
        %s288 = sand.u32 %s143, 1
        %s289 = scalar_lea.sflag [#allocation4], %s288
        %s290 = sand.u32 %s143, 1
        %s291 = smul.addr %s290, 8
        %s292 = scalar_lea.vmem [#allocation12], %s291
        %v293 = vld [vmem:[%s249] sm:$0xff]
        %v294 = vld [vmem:[#allocation6] sm:$0xff]
        %v295 = vld [vmem:[#allocation8] sm:$0xff]
        %v297 = vcombine.high %v293, %v293
        %vm299 = vcmask 1043456
        %v300 = vsel %vm299, %v293, 0.0
        %v301 = vsel %vm299, %v297, 0.0
        %v302 = vadd.f32 %v300, %v301
        %303 = vadd.xlane.f32.xlu0 %v302
        %v304 = vpop.xlane.xlu0 %303
        %v305 = vmul.f32 %v293, %v293
        %v307 = vcombine.high %v305, %v305
        %v309 = vsel %vm299, %v305, 0.0
        %v310 = vsel %vm299, %v307, 0.0
        %v311 = vadd.f32 %v309, %v310
        %312 = vadd.xlane.f32.xlu0 %v311
        %v313 = vpop.xlane.xlu0 %312
        %v314 = vmul.f32 %v304, 0.00390625
        %v315 = vmul.f32 %v313, 0.00390625
        %v316 = vmul.f32 %v314, %v314
        %v317 = vsub.f32 %v315, %v316
        %v318 = vsel %vm299, %v304, 0.0
        %v319 = vrot.slane %v318, 4
        %v320 = vadd.f32 %v318, %v319
        %v321 = vrot.slane %v320, 2
        %v322 = vadd.f32 %v320, %v321
        %v323 = vrot.slane %v322, 1
        %v324 = vadd.f32 %v322, %v323
        %v325 = vmul.f32 %v324, 0.0009765625
        %v326 = vsel %vm299, %v313, 0.0
        %v327 = vrot.slane %v326, 4
        %v328 = vadd.f32 %v326, %v327
        %v329 = vrot.slane %v328, 2
        %v330 = vadd.f32 %v328, %v329
        %v331 = vrot.slane %v330, 1
        %v332 = vadd.f32 %v330, %v331
        %v333 = vmul.f32 %v332, 0.0009765625
        %v334 = vmul.f32 %v325, %v325
        %v335 = vsub.f32 %v333, %v334
        %v338 = vunpack.c.l.s4 839922192
        %v339 = vunpack.c.0.s8 %v338
        %v340 = vlaneseq
        %v341 = vshrl.u32 %v340, 7
        %v342 = vsub.s32 %v339, %v341
        %v343 = vrot.slane %v314, %v342
        %v345 = vsub.f32 %v293, %v343
        %v346 = vadd.f32 %v317, 1e-05
        %v347 = vrsqrt.pop %v346
        %v350 = vunpack.c.l.s4 839922192
        %v351 = vunpack.c.0.s8 %v350
        %v352 = vlaneseq
        %v353 = vshrl.u32 %v352, 7
        %v354 = vsub.s32 %v351, %v353
        %v355 = vrot.slane %v347, %v354
        %v357 = vmul.f32 %v345, %v355
        %v358 = vsub.f32 %v293, %v325
        %v359 = vadd.f32 %v335, 1e-05
        %v360 = vrsqrt.pop %v359
        %v361 = vmul.f32 %v358, %v360
        %v362 = vmul.f32 %v361, %v294
        %v363 = vadd.f32 %v362, %v295
        %s364 = sld [smem:[#allocation9]]
        %v365 = vstv %s364
        %v366 = vmul.f32 %v357, %v365
        %s367 = sld [smem:[#allocation10]]
        %v368 = vstv %s367
        %v369 = vmul.f32 %v363, %v368
        %v370 = vadd.f32 %v366, %v369
        %s371 = sld [smem:[#allocation9 + $0x1]]
        %v372 = vstv %s371
        %v373 = vmul.f32 %v357, %v372
        %v375 = vrot.slane %v373, 5
        %v376 = vrot.slane %v375, 4
        %v378 = vadd.f32 %v370, %v376
        %s379 = sld [smem:[#allocation10 + $0x1]]
        %v380 = vstv %s379
        %v381 = vmul.f32 %v363, %v380
        %v383 = vrot.slane %v381, 5
        %v384 = vrot.slane %v383, 4
        %v386 = vadd.f32 %v378, %v384
        %s387 = sld [smem:[#allocation9 + $0x2]]
        %v388 = vstv %s387
        %v389 = vmul.f32 %v357, %v388
        %v391 = vrot.slane %v389, 6
        %v392 = vrot.slane %v391, 4
        %v394 = vadd.f32 %v386, %v392
        %s395 = sld [smem:[#allocation10 + $0x2]]
        %v396 = vstv %s395
        %v397 = vmul.f32 %v363, %v396
        %v399 = vrot.slane %v397, 6
        %v400 = vrot.slane %v399, 4
        %v402 = vadd.f32 %v394, %v400
        %s403 = sld [smem:[#allocation9 + $0x3]]
        %v404 = vstv %s403
        %v405 = vmul.f32 %v357, %v404
        %v407 = vrot.slane %v405, 7
        %v408 = vrot.slane %v407, 4
        %v410 = vadd.f32 %v402, %v408
        %s411 = sld [smem:[#allocation10 + $0x3]]
        %v412 = vstv %s411
        %v413 = vmul.f32 %v363, %v412
        %v415 = vrot.slane %v413, 7
        %v416 = vrot.slane %v415, 4
        %v418 = vadd.f32 %v410, %v416
        %v421 = vunpack.c.l.s4 1966171168
        %v422 = vunpack.c.0.s8 %v421
        %v423 = vlaneseq
        %v424 = vshrl.u32 %v423, 7
        %v425 = vsub.s32 %v422, %v424
        %v426 = vrot.slane %v418, %v425
        %v428 = vunpack.c.l.s4 1966171168
        %v429 = vunpack.c.0.s8 %v428
        %v430 = vlaneseq
        %v431 = vshrl.u32 %v430, 7
        %v432 = vsub.s32 %v429, %v431
        %v433 = vrot.slane %v426, %v432
        %v435 = vlaneseq
        %vm436 = vcmp.ge.s32.totalorder %v435, 0
        %vm437 = vcmp.lt.s32.totalorder %v435, 256
        %vm438 = vmand %vm436, %vm437
        %439 = vst.msk [vmem:[%s292] ss:$4 sm:$0x3] %vm438, %v433
        %s440 = sld [smem:[#allocation9 + $0x80]]
        %v441 = vstv %s440
        %v442 = vmul.f32 %v357, %v441
        %s443 = sld [smem:[#allocation10 + $0x80]]
        %v444 = vstv %s443
        %v445 = vmul.f32 %v363, %v444
        %v446 = vadd.f32 %v442, %v445
        %s447 = sld [smem:[#allocation9 + $0x81]]
        %v448 = vstv %s447
        %v449 = vmul.f32 %v357, %v448
        %v451 = vrot.slane %v449, 5
        %v452 = vrot.slane %v451, 4
        %v454 = vadd.f32 %v446, %v452
        %s455 = sld [smem:[#allocation10 + $0x81]]
        %v456 = vstv %s455
        %v457 = vmul.f32 %v363, %v456
        %v459 = vrot.slane %v457, 5
        %v460 = vrot.slane %v459, 4
        %v462 = vadd.f32 %v454, %v460
        %s463 = sld [smem:[#allocation9 + $0x82]]
        %v464 = vstv %s463
        %v465 = vmul.f32 %v357, %v464
        %v467 = vrot.slane %v465, 6
        %v468 = vrot.slane %v467, 4
        %v470 = vadd.f32 %v462, %v468
        %s471 = sld [smem:[#allocation10 + $0x82]]
        %v472 = vstv %s471
        %v473 = vmul.f32 %v363, %v472
        %v475 = vrot.slane %v473, 6
        %v476 = vrot.slane %v475, 4
        %v478 = vadd.f32 %v470, %v476
        %s479 = sld [smem:[#allocation9 + $0x83]]
        %v480 = vstv %s479
        %v481 = vmul.f32 %v357, %v480
        %v483 = vrot.slane %v481, 7
        %v484 = vrot.slane %v483, 4
        %v486 = vadd.f32 %v478, %v484
        %s487 = sld [smem:[#allocation10 + $0x83]]
        %v488 = vstv %s487
        %v489 = vmul.f32 %v363, %v488
        %v491 = vrot.slane %v489, 7
        %v492 = vrot.slane %v491, 4
        %v494 = vadd.f32 %v486, %v492
        %v497 = vunpack.c.l.s4 1966171168
        %v498 = vunpack.c.0.s8 %v497
        %v499 = vlaneseq
        %v500 = vshrl.u32 %v499, 7
        %v501 = vsub.s32 %v498, %v500
        %v502 = vrot.slane %v494, %v501
        %v504 = vunpack.c.l.s4 1966171168
        %v505 = vunpack.c.0.s8 %v504
        %v506 = vlaneseq
        %v507 = vshrl.u32 %v506, 7
        %v508 = vsub.s32 %v505, %v507
        %v509 = vrot.slane %v502, %v508
        %s511 = scalar_lea.vmem %s292, 1 [#allocation12]
        %512 = vst.msk [vmem:[%s511] ss:$4 sm:$0x3] %vm438, %v509
        %s513 = sld [smem:[#allocation9 + $0x100]]
        %v514 = vstv %s513
        %v515 = vmul.f32 %v357, %v514
        %s516 = sld [smem:[#allocation10 + $0x100]]
        %v517 = vstv %s516
        %v518 = vmul.f32 %v363, %v517
        %v519 = vadd.f32 %v515, %v518
        %s520 = sld [smem:[#allocation9 + $0x101]]
        %v521 = vstv %s520
        %v522 = vmul.f32 %v357, %v521
        %v524 = vrot.slane %v522, 5
        %v525 = vrot.slane %v524, 4
        %v527 = vadd.f32 %v519, %v525
        %s528 = sld [smem:[#allocation10 + $0x101]]
        %v529 = vstv %s528
        %v530 = vmul.f32 %v363, %v529
        %v532 = vrot.slane %v530, 5
        %v533 = vrot.slane %v532, 4
        %v535 = vadd.f32 %v527, %v533
        %s536 = sld [smem:[#allocation9 + $0x102]]
        %v537 = vstv %s536
        %v538 = vmul.f32 %v357, %v537
        %v540 = vrot.slane %v538, 6
        %v541 = vrot.slane %v540, 4
        %v543 = vadd.f32 %v535, %v541
        %s544 = sld [smem:[#allocation10 + $0x102]]
        %v545 = vstv %s544
        %v546 = vmul.f32 %v363, %v545
        %v548 = vrot.slane %v546, 6
        %v549 = vrot.slane %v548, 4
        %v551 = vadd.f32 %v543, %v549
        %s552 = sld [smem:[#allocation9 + $0x103]]
        %v553 = vstv %s552
        %v554 = vmul.f32 %v357, %v553
        %v556 = vrot.slane %v554, 7
        %v557 = vrot.slane %v556, 4
        %v559 = vadd.f32 %v551, %v557
        %s560 = sld [smem:[#allocation10 + $0x103]]
        %v561 = vstv %s560
        %v562 = vmul.f32 %v363, %v561
        %v564 = vrot.slane %v562, 7
        %v565 = vrot.slane %v564, 4
        %v567 = vadd.f32 %v559, %v565
        %v570 = vunpack.c.l.s4 1966171168
        %v571 = vunpack.c.0.s8 %v570
        %v572 = vlaneseq
        %v573 = vshrl.u32 %v572, 7
        %v574 = vsub.s32 %v571, %v573
        %v575 = vrot.slane %v567, %v574
        %v577 = vunpack.c.l.s4 1966171168
        %v578 = vunpack.c.0.s8 %v577
        %v579 = vlaneseq
        %v580 = vshrl.u32 %v579, 7
        %v581 = vsub.s32 %v578, %v580
        %v582 = vrot.slane %v575, %v581
        %s584 = scalar_lea.vmem %s292, 2 [#allocation12]
        %585 = vst.msk [vmem:[%s584] ss:$4 sm:$0x3] %vm438, %v582
        %s586 = sld [smem:[#allocation9 + $0x180]]
        %v587 = vstv %s586
        %v588 = vmul.f32 %v357, %v587
        %s589 = sld [smem:[#allocation10 + $0x180]]
        %v590 = vstv %s589
        %v591 = vmul.f32 %v363, %v590
        %v592 = vadd.f32 %v588, %v591
        %s593 = sld [smem:[#allocation9 + $0x181]]
        %v594 = vstv %s593
        %v595 = vmul.f32 %v357, %v594
        %v597 = vrot.slane %v595, 5
        %v598 = vrot.slane %v597, 4
        %v600 = vadd.f32 %v592, %v598
        %s601 = sld [smem:[#allocation10 + $0x181]]
        %v602 = vstv %s601
        %v603 = vmul.f32 %v363, %v602
        %v605 = vrot.slane %v603, 5
        %v606 = vrot.slane %v605, 4
        %v608 = vadd.f32 %v600, %v606
        %s609 = sld [smem:[#allocation9 + $0x182]]
        %v610 = vstv %s609
        %v611 = vmul.f32 %v357, %v610
        %v613 = vrot.slane %v611, 6
        %v614 = vrot.slane %v613, 4
        %v616 = vadd.f32 %v608, %v614
        %s617 = sld [smem:[#allocation10 + $0x182]]
        %v618 = vstv %s617
        %v619 = vmul.f32 %v363, %v618
        %v621 = vrot.slane %v619, 6
        %v622 = vrot.slane %v621, 4
        %v624 = vadd.f32 %v616, %v622
        %s625 = sld [smem:[#allocation9 + $0x183]]
        %v626 = vstv %s625
        %v627 = vmul.f32 %v357, %v626
        %v629 = vrot.slane %v627, 7
        %v630 = vrot.slane %v629, 4
        %v632 = vadd.f32 %v624, %v630
        %s633 = sld [smem:[#allocation10 + $0x183]]
        %v634 = vstv %s633
        %v635 = vmul.f32 %v363, %v634
        %v637 = vrot.slane %v635, 7
        %v638 = vrot.slane %v637, 4
        %v640 = vadd.f32 %v632, %v638
        %v643 = vunpack.c.l.s4 1966171168
        %v644 = vunpack.c.0.s8 %v643
        %v645 = vlaneseq
        %v646 = vshrl.u32 %v645, 7
        %v647 = vsub.s32 %v644, %v646
        %v648 = vrot.slane %v640, %v647
        %v650 = vunpack.c.l.s4 1966171168
        %v651 = vunpack.c.0.s8 %v650
        %v652 = vlaneseq
        %v653 = vshrl.u32 %v652, 7
        %v654 = vsub.s32 %v651, %v653
        %v655 = vrot.slane %v648, %v654
        %s657 = scalar_lea.vmem %s292, 3 [#allocation12]
        %658 = vst.msk [vmem:[%s657] ss:$4 sm:$0x3] %vm438, %v655
        %s659 = sand.u32 %s143, 1
        %s660 = scalar_lea.sflag [#allocation4], %s659
        %s661 = sand.u32 %s143, 1
        %s662 = smul.addr %s661, 8
        %s663 = scalar_lea.vmem [#allocation12], %s662
        // Predicated region
        $region61: #{tpu_custom_call.1} parent=39 // pred_check
          %p664 = pneg %p153
        $region62: #{tpu_custom_call.1} parent=39 // pred_check_branch
          %666 = sbr.rel (%p664) target = $region64
        $region63: #{tpu_custom_call.1} parent=39 // pred_region
          %s668 = ssub.s32 128, 128
          %669 = vsyncadd %s660, %s668
          %s670 = smul.addr %s25, 2
          %s671 = smul.addr %s670, 64
          %s672 = scalar_lea.hbm %s5, %s671
          %s674 = sshll.u32 %s663, 4
          %s675 = int_to_ptr.vmem [resolvable:$true] %s674
          %677 = dma.vmem_to_hbm [thread:$0]  %s675, 128, %s672, %s660
        $region64: #{tpu_custom_call.1} parent=39 // pred_fallthru
          _
      $region40: #{tpu_custom_call.1} parent=5 // pred_fallthru
        _
      %p678 = scmp.le.s32.totalorder 2, %s20
      // Predicated region
      $region65: #{tpu_custom_call.1} parent=5 // pred_check
        %p679 = pneg %p678
      $region66: #{tpu_custom_call.1} parent=5 // pred_check_branch
        %681 = sbr.rel (%p679) target = $region68
      $region67: #{tpu_custom_call.1} parent=5 // pred_region
        %s682 = ssub.s32 %s20, 2
        // Predicated region
        $region69: #{tpu_custom_call.1} parent=67 // pred_check
          %p683 = pneg %p159
        $region70: #{tpu_custom_call.1} parent=67 // pred_check_branch
          %685 = sbr.rel (%p683) target = $region72
        $region71: #{tpu_custom_call.1} parent=67 // pred_region
          %s686 = sand.u32 %s144, 1
          %s687 = scalar_lea.sflag [#allocation4], %s686
          %s688 = sand.u32 %s144, 1
          %s689 = smul.addr %s688, 8
          %s690 = scalar_lea.vmem [#allocation12], %s689
          %691 = dma.done %s687, 128
        $region72: #{tpu_custom_call.1} parent=67 // pred_fallthru
          _
      $region68: #{tpu_custom_call.1} parent=5 // pred_fallthru
        _
    $region6: #{tpu_custom_call.1} parent=1 // loop_footer
      %s24 = sadd.s32 1, %s20
    $region7: #{tpu_custom_call.1} parent=1 // loop_footer_branch
      %19 = sbr.rel target = $region3
    $region8: #{tpu_custom_call.1} parent=1 // loop_exit
      _
    %692 = vsyncpa [#allocation3], 1
    %s693 = scalar_lea.sflag [#allocation3], 1
    %694 = vsyncpa %s693, 1
    %695 = vsyncpa [#allocation7], 1
    %696 = vsyncpa [#allocation4], 1
    %s697 = scalar_lea.sflag [#allocation4], 1
    %698 = vsyncpa %s697, 1
    %699 = vsyncpa [#allocation5], 1
    %s700 = scalar_lea.sflag [#allocation5], 1
    %701 = vsyncpa %s700, 1
    %702 = vsyncpa [#allocation11], 1

</llo_original>
